<compile_context>
chip_gen: v7x
topology: tpu7x:2x2x1
jax: 0.10.0
libtpu: 0.0.40
codegen_flags: <defaults>
</compile_context>

<pallas_src>
import functools

import jax
import jax.numpy as jnp
from jax.experimental import pallas as pl
from jax.experimental.pallas import tpu as pltpu


def _round_up(x, m):
    return ((x + m - 1) // m) * m


def _choose_tile_m(n, tile_m):
    """Pick the M tile: one block for small N, else >=2 grid steps, 256-multiples."""
    if n <= tile_m:
        return _round_up(n, 8)                      # single block covering all rows
    half = _round_up(pl.cdiv(n, 2), 256)            # keep >= 2 steps (v7x has 2 TCs)
    return max(256, min(tile_m, half))


def vis_ebd_kernel(x_ref, w_ref, b_ref, o_ref):
    # x_ref: (TM, D_in) tile of flattened visual features (the /100 scale is
    #        already folded into w_ref).
    # w_ref: (D_in, D_out) pre-transposed, pre-scaled weight (resident across grid).
    # b_ref: (1, D_out) bias (resident across grid).
    y = jnp.dot(x_ref[...], w_ref[...], preferred_element_type=jnp.float32)
    y = y + b_ref[...]
    # TODO(synk): nn.Dropout is identity in eval mode; training-mode dropout
    # (pltpu.prng_random_bits-based masking) is intentionally not applied here.
    o_ref[...] = jnp.tanh(y).astype(o_ref.dtype)


@functools.partial(jax.jit, static_argnames=("tile_m", "out_dtype"))
def vis_ebd(feats, weight_scaled_t, bias, *, tile_m=512, out_dtype=None):
    """feats: [B, S, D_in]; weight_scaled_t: [D_in, D_out] (includes the /100 fold);
    bias: [D_out]. Returns [B, S, D_out]."""
    B, S, D_in = feats.shape
    D_out = weight_scaled_t.shape[1]
    N = B * S
    dtype_out = feats.dtype if out_dtype is None else out_dtype

    tm = _choose_tile_m(N, tile_m)
    n_pad = _round_up(N, tm)
    grid_m = n_pad // tm

    x = feats.reshape(N, D_in)
    if n_pad != N:
        x = jnp.pad(x, ((0, n_pad - N), (0, 0)))    # pad rows; sliced off below
    b2 = bias.reshape(1, D_out)

    out = pl.pallas_call(
        vis_ebd_kernel,
        out_shape=jax.ShapeDtypeStruct((n_pad, D_out), dtype_out),
        grid_spec=pltpu.PrefetchScalarGridSpec(
            num_scalar_prefetch=0,
            grid=(grid_m,),
            in_specs=[
                pl.BlockSpec((tm, D_in), lambda i: (i, 0)),
                pl.BlockSpec((D_in, D_out), lambda i: (0, 0)),   # grid-invariant
                pl.BlockSpec((1, D_out), lambda i: (0, 0)),      # grid-invariant
            ],
            out_specs=pl.BlockSpec((tm, D_out), lambda i: (i, 0)),
        ),
        compiler_params=pltpu.CompilerParams(
            dimension_semantics=("parallel",)),
    )(x, weight_scaled_t, b2)

    if n_pad != N:
        out = out[:N]
    return out.reshape(B, S, D_out)


def init_params(key, vis_fc_dim, word_ebd_dim):
    """Deterministic nn.Linear-style init: U(-1/sqrt(in), 1/sqrt(in)).
    Returns weight_t [in, out] (transposed from torch's [out, in]) and bias [out]."""
    kw, kb = jax.random.split(key)
    bound = 1.0 / jnp.sqrt(jnp.float32(vis_fc_dim))
    weight_t = jax.random.uniform(kw, (vis_fc_dim, word_ebd_dim),
                                  minval=-bound, maxval=bound, dtype=jnp.float32)
    bias = jax.random.uniform(kb, (word_ebd_dim,),
                              minval=-bound, maxval=bound, dtype=jnp.float32)
    return weight_t, bias


def prepare_params(weight_t, bias):
    """One-time parameter prep: fold the module's /100 input scale into the weight."""
    return 0.01 * weight_t, bias


if __name__ == "__main__":
    # Shapes consistent with the module: args.vis_fc_dim=64, args.word_ebd_dim=128
    B, S, VIS_FC_DIM, WORD_EBD_DIM = 2, 8, 64, 128

    key = jax.random.PRNGKey(0)
    k_feat, k_param, k_feat2 = jax.random.split(key, 3)

    feats = jax.random.normal(k_feat, (B, S, VIS_FC_DIM), dtype=jnp.float32) * 50.0
    weight_t, bias = init_params(k_param, VIS_FC_DIM, WORD_EBD_DIM)
    w_scaled_t, bias = prepare_params(weight_t, bias)   # fold /100 once, outside jit

    # Small case: single-block path.
    out = jax.block_until_ready(vis_ebd(feats, w_scaled_t, bias))
    ref = jnp.tanh((feats / 100.0) @ weight_t + bias)
    assert out.shape == (B, S, WORD_EBD_DIM)
    assert jnp.allclose(out, ref, atol=1e-5, rtol=1e-5)

    # Larger case: exercises the padded, multi-step tiled path (N=1332 -> tm=512, grid=3).
    B2, S2 = 4, 333
    feats2 = jax.random.normal(k_feat2, (B2, S2, VIS_FC_DIM), dtype=jnp.float32) * 50.0
    out2 = jax.block_until_ready(vis_ebd(feats2, w_scaled_t, bias))
    ref2 = jnp.tanh((feats2 / 100.0) @ weight_t + bias)
    assert out2.shape == (B2, S2, WORD_EBD_DIM)
    assert jnp.allclose(out2, ref2, atol=1e-5, rtol=1e-5)

    # Optional bf16 output (halves output HBM traffic; tanh range [-1,1] so loss is benign).
    out_bf16 = jax.block_until_ready(
        vis_ebd(feats2, w_scaled_t, bias, out_dtype=jnp.bfloat16))
    assert out_bf16.dtype == jnp.bfloat16
    assert jnp.allclose(out_bf16.astype(jnp.float32), ref2, atol=1e-2, rtol=1e-2)

    print("KERNEL_OK")
</pallas_src>

<mosaic_0001>
module attributes {stable_mosaic.version = 11 : i64} {
  func.func @vis_ebd_kernel(%arg0: i32, %arg1: memref<16x64xf32, #tpu.memory_space<vmem>>, %arg2: memref<64x128xf32, #tpu.memory_space<vmem>>, %arg3: memref<1x128xf32, #tpu.memory_space<vmem>>, %arg4: memref<16x128xf32, #tpu.memory_space<vmem>>) attributes {dimension_semantics = [#tpu.dimension_semantics<parallel>], iteration_bounds = array<i64: 1>, scalar_prefetch = 0 : i64, scratch_operands = 0 : i64, tpu.core_type = #tpu.core_type<tc>, window_params = [{transform_indices = @transform_0, window_bounds = array<i64: 16, 64>}, {pipeline_mode = #tpu.pipeline_mode<synchronous>, transform_indices = @transform_1, window_bounds = array<i64: 64, 128>}, {pipeline_mode = #tpu.pipeline_mode<synchronous>, transform_indices = @transform_2, window_bounds = array<i64: 1, 128>}, {transform_indices = @transform_3, window_bounds = array<i64: 16, 128>}]} {
    %c0 = arith.constant 0 : index
    %c0_0 = arith.constant 0 : index
    %0 = vector.load %arg1[%c0, %c0_0] : memref<16x64xf32, #tpu.memory_space<vmem>>, vector<16x64xf32>
    %c0_1 = arith.constant 0 : index
    %c0_2 = arith.constant 0 : index
    %1 = vector.load %arg2[%c0_1, %c0_2] : memref<64x128xf32, #tpu.memory_space<vmem>>, vector<64x128xf32>
    %cst = arith.constant dense<0.000000e+00> : vector<16x128xf32>
    %2 = tpu.matmul %0, %1, %cst {dimension_numbers = #tpu.dot_dimension_numbers<[1], [0], [0], [1], [0, 0, 1, 1], [], []>} : vector<16x64xf32>, vector<64x128xf32>, vector<16x128xf32> -> vector<16x128xf32>
    %c0_3 = arith.constant 0 : index
    %c0_4 = arith.constant 0 : index
    %3 = vector.load %arg3[%c0_3, %c0_4] : memref<1x128xf32, #tpu.memory_space<vmem>>, vector<1x128xf32>
    %4 = vector.broadcast %3 : vector<1x128xf32> to vector<16x128xf32>
    %5 = arith.addf %2, %4 : vector<16x128xf32>
    %6 = math.tanh %5 : vector<16x128xf32>
    %c0_5 = arith.constant 0 : index
    %c0_6 = arith.constant 0 : index
    %7 = vector.load %arg4[%c0_5, %c0_6] : memref<16x128xf32, #tpu.memory_space<vmem>>, vector<16x128xf32>
    tpu.vector_store %arg4[%c0_5, %c0_6], %6 {strides = array<i32>} : memref<16x128xf32, #tpu.memory_space<vmem>>, vector<16x128xf32>,
    return
  }
  func.func @transform_0(%arg0: i32) -> (i32, i32) {
    %c0_i32 = arith.constant 0 : i32
    %c0_i32_0 = arith.constant 0 : i32
    return %arg0, %c0_i32 : i32, i32
  }
  func.func @transform_1(%arg0: i32) -> (i32, i32) {
    %c0_i32 = arith.constant 0 : i32
    %c0_i32_0 = arith.constant 0 : i32
    %c0_i32_1 = arith.constant 0 : i32
    return %c0_i32, %c0_i32_0 : i32, i32
  }
  func.func @transform_2(%arg0: i32) -> (i32, i32) {
    %c0_i32 = arith.constant 0 : i32
    %c0_i32_0 = arith.constant 0 : i32
    %c0_i32_1 = arith.constant 0 : i32
    return %c0_i32, %c0_i32_0 : i32, i32
  }
  func.func @transform_3(%arg0: i32) -> (i32, i32) {
    %c0_i32 = arith.constant 0 : i32
    %c0_i32_0 = arith.constant 0 : i32
    return %arg0, %c0_i32 : i32, i32
  }
}

</mosaic_0001>

<llo_original>
// kernel: vis_ebd.1
$region0: #{vis_ebd.1}
  #allocation0 [shape = 'u32[]', space=smem, size = 0x4, offset = 0x4, fixed_abs, tag = 'smem constant byte address 0x4 - core index']
  #allocation1 [shape = 'u32[144,128]{1,0:T(1,128)}', space=vmem, size = 0x12000, scoped, tag = 'internal scratch']
  %s0 = inlined_call_operand.hbm [shape: f32[16,64], index: 0, kind: input, shape index: {}]
  %s1 = inlined_call_operand.hbm [shape: f32[64,128], index: 1, kind: input, shape index: {}]
  %s2 = inlined_call_operand.vmem [shape: f32[1,128], index: 2, kind: input, shape index: {}]
  %s3 = inlined_call_operand.hbm [shape: f32[16,128], index: 3, kind: output, shape index: {}]
  %s4 = sld [smem:[#allocation0]]
  $region30: #{vis_ebd.1} parent=0
    _
  %s6 = ssub.s32 1, %s4
  %s7 = scalar_select 0, %s6, %s4
  $region1: #{vis_ebd.1} parent=0
    #allocation2 [shape = 'u8[8192]{0}', space=vmem, size = 0x2000, scoped, tag = 'input window, operand 0, single buffered']
    #allocation3 [shape = 's32[1]{0}', space=sflag, size = 0x4, scoped, tag = 'scoped memory for vis_ebd.1']
    #allocation4 [shape = 's32[1]{0}', space=sflag, size = 0x4, scoped, tag = 'scoped memory for vis_ebd.1']
    #allocation5 [shape = 'u8[32768]{0}', space=vmem, size = 0x8000, scoped, tag = 'input window, operand 1, single buffered']
    #allocation6 [shape = 's32[1]{0}', space=sflag, size = 0x4, scoped, tag = 'scoped memory for vis_ebd.1']
    #allocation7 [shape = 'u8[8192]{0}', space=vmem, size = 0x2000, scoped, tag = 'output window, operand 0, single buffered']
    %8 = vsyncpa [#allocation3], 0
    %9 = vsyncpa [#allocation6], 0
    %10 = vsyncpa [#allocation4], 0
    // Predicated region
    $region2: #{vis_ebd.1} parent=1 // pred_check
      _
    $region3: #{vis_ebd.1} parent=1 // pred_check_branch
      %12 = sbr.rel (0) target = $region5
    $region4: #{vis_ebd.1} parent=1 // pred_region
      %s14 = ssub.s32 256, 256
      %15 = vsyncadd [#allocation3], %s14
      %s16 = sshll.u32 [#allocation2], 4
      %s17 = int_to_ptr.vmem [resolvable:$true] %s16
      %22 = dma.hbm_to_vmem [thread:$0]  %s0, 256, %s17, [#allocation3], 128, 128, 8
    $region5: #{vis_ebd.1} parent=1 // pred_fallthru
      _
    // Predicated region
    $region6: #{vis_ebd.1} parent=1 // pred_check
      _
    $region7: #{vis_ebd.1} parent=1 // pred_check_branch
      %24 = sbr.rel (0) target = $region9
    $region8: #{vis_ebd.1} parent=1 // pred_region
      %s26 = ssub.s32 1024, 1024
      %27 = vsyncadd [#allocation6], %s26
      %s28 = sshll.u32 [#allocation5], 4
      %s29 = int_to_ptr.vmem [resolvable:$true] %s28
      %34 = dma.hbm_to_vmem [thread:$0]  %s1, 1024, %s29, [#allocation6], 128, 128, 8
    $region9: #{vis_ebd.1} parent=1 // pred_fallthru
      _
    // Predicated region
    $region10: #{vis_ebd.1} parent=1 // pred_check
      _
    $region11: #{vis_ebd.1} parent=1 // pred_check_branch
      %36 = sbr.rel (0) target = $region13
    $region12: #{vis_ebd.1} parent=1 // pred_region
      _
    $region13: #{vis_ebd.1} parent=1 // pred_fallthru
      _
    // Predicated region
    $region14: #{vis_ebd.1} parent=1 // pred_check
      _
    $region15: #{vis_ebd.1} parent=1 // pred_check_branch
      %38 = sbr.rel (0) target = $region17
    $region16: #{vis_ebd.1} parent=1 // pred_region
      %39 = dma.done [#allocation3], 256
    $region17: #{vis_ebd.1} parent=1 // pred_fallthru
      _
    // Predicated region
    $region18: #{vis_ebd.1} parent=1 // pred_check
      _
    $region19: #{vis_ebd.1} parent=1 // pred_check_branch
      %41 = sbr.rel (0) target = $region21
    $region20: #{vis_ebd.1} parent=1 // pred_region
      %42 = dma.done [#allocation6], 1024
    $region21: #{vis_ebd.1} parent=1 // pred_fallthru
      _
    %v43 = vld [vmem:[#allocation2] sm:$0xff]
    %v44 = vld [vmem:[#allocation2 + $0x8] sm:$0xff]
    %v45 = vld [vmem:[#allocation5] sm:$0xff]
    %v46 = vld [vmem:[#allocation5 + $0x8] sm:$0xff]
    %v47 = vld [vmem:[#allocation5 + $0x10] sm:$0xff]
    %v48 = vld [vmem:[#allocation5 + $0x18] sm:$0xff]
    %v49 = vld [vmem:[#allocation5 + $0x20] sm:$0xff]
    %v50 = vld [vmem:[#allocation5 + $0x28] sm:$0xff]
    %v51 = vld [vmem:[#allocation5 + $0x30] sm:$0xff]
    %v52 = vld [vmem:[#allocation5 + $0x38] sm:$0xff]
    %v53 = vld [vmem:[%s2] sm:$0x1]
    %v55 = vlaneseq
    %v56 = vshrl.u32 %v55, 7
    %v57 = vsub.s32 0, %v56
    %v58 = vrot.slane %v53, %v57
    %vm60 = vcmask 523264
    %v62 = vsel %vm60, %v43, 0
    %v65 = vsel %vm60, %v44, 0
    %67 = vmatprep.subr.mxu0 0.0
    %68 = vmatpush1.msra.mxu0 %v45
    %69 = vmatprep.subr.mxu0 0.0
    %70 = vmatpush1.msra.mxu0 %v46
    %71 = vmatprep.subr.mxu0 0.0
    %72 = vmatpush1.msra.mxu0 %v47
    %73 = vmatprep.subr.mxu0 0.0
    %74 = vmatpush1.msra.mxu0 %v48
    %75 = vmatprep.subr.mxu0 0.0
    %76 = vmatpush1.msra.mxu0 %v49
    %77 = vmatprep.subr.mxu0 0.0
    %78 = vmatpush1.msra.mxu0 %v50
    %79 = vmatprep.subr.mxu0 0.0
    %80 = vmatpush1.msra.mxu0 %v51
    %81 = vmatprep.subr.mxu0 0.0
    %82 = vmatpush1.msra.mxu0 %v52
    %83 = vmatprep.subr.mxu0 0.0
    %84 = vmatpush1.msra.mxu0 0.0
    %85 = vmatprep.subr.mxu0 0.0
    %86 = vmatpush1.msra.mxu0 0.0
    %87 = vmatprep.subr.mxu0 0.0
    %88 = vmatpush1.msra.mxu0 0.0
    %89 = vmatprep.subr.mxu0 0.0
    %90 = vmatpush1.msra.mxu0 0.0
    %91 = vmatprep.subr.mxu0 0.0
    %92 = vmatpush1.msra.mxu0 0.0
    %93 = vmatprep.subr.mxu0 0.0
    %94 = vmatpush1.msra.mxu0 0.0
    %95 = vmatprep.subr.mxu0 0.0
    %96 = vmatpush1.msra.mxu0 0.0
    %97 = vmatprep.subr.mxu0 0.0
    %98 = vmatpush1.msra.mxu0 0.0
    %99 = vmatprep.subr.mxu0 0.0
    %100 = vmatpush1.msra.mxu0 0.0
    %101 = vmatprep.subr.mxu0 0.0
    %102 = vmatpush1.msra.mxu0 0.0
    %103 = vmatprep.subr.mxu0 0.0
    %104 = vmatpush1.msra.mxu0 0.0
    %105 = vmatprep.subr.mxu0 0.0
    %106 = vmatpush1.msra.mxu0 0.0
    %107 = vmatprep.subr.mxu0 0.0
    %108 = vmatpush1.msra.mxu0 0.0
    %109 = vmatprep.subr.mxu0 0.0
    %110 = vmatpush1.msra.mxu0 0.0
    %111 = vmatprep.subr.mxu0 0.0
    %112 = vmatpush1.msra.mxu0 0.0
    %113 = vmatprep.subr.mxu0 0.0
    %114 = vmatpush1.msra.mxu0 0.0
    %115 = vmatprep.subr.mxu0 0.0
    %116 = vmatpush1.msra.mxu0 0.0
    %117 = vmatprep.subr.mxu0 0.0
    %118 = vmatpush1.msra.mxu0 0.0
    %119 = vmatprep.subr.mxu0 0.0
    %120 = vmatpush1.msra.mxu0 0.0
    %121 = vmatprep.subr.mxu0 0.0
    %122 = vmatpush1.msra.mxu0 0.0
    %123 = vmatprep.subr.mxu0 0.0
    %124 = vmatpush1.msra.mxu0 0.0
    %125 = vmatprep.subr.mxu0 0.0
    %126 = vmatpush1.msra.mxu0 0.0
    %127 = vmatprep.subr.mxu0 0.0
    %128 = vmatpush1.msra.mxu0 0.0
    %129 = vmatprep.subr.mxu0 0.0
    %130 = vmatpush1.msra.mxu0 0.0
    %131 = vmatprep.mubr.f32.mxu0 0.0
    %132 = vmatmul.mubr.f32.gmra.mrb[0].mxu0 %v62
    %v133 = vpop.f32.mrb[0].mxu0
    %v134 = vadd.f32 %v58, %v133
    %v135 = vpop.f32.mrb[0].mxu0
    %136 = vmatprep.mubr.f32.mxu0 0.0
    %137 = vmatmul.mubr.f32.gmra.mrb[0].mxu0 %v65
    %v138 = vpop.f32.mrb[0].mxu0
    %v139 = vadd.f32 %v58, %v138
    %v140 = vpop.f32.mrb[0].mxu0
    %141 = vdwg.mxu0
    %v142 = vtanh.pop %v134
    %v143 = vtanh.pop %v139
    %144 = vst [vmem:[#allocation7] sm:$0xff] %v142
    %145 = vst [vmem:[#allocation7 + $0x8] sm:$0xff] %v143
    // Predicated region
    $region22: #{vis_ebd.1} parent=1 // pred_check
      _
    $region23: #{vis_ebd.1} parent=1 // pred_check_branch
      %147 = sbr.rel (0) target = $region25
    $region24: #{vis_ebd.1} parent=1 // pred_region
      %s149 = ssub.s32 256, 256
      %150 = vsyncadd [#allocation4], %s149
      %s151 = sshll.u32 [#allocation7], 4
      %s152 = int_to_ptr.vmem [resolvable:$true] %s151
      %157 = dma.vmem_to_hbm [thread:$0]  %s152, 256, %s3, [#allocation4], 128, 128, 8
    $region25: #{vis_ebd.1} parent=1 // pred_fallthru
      _
    // Predicated region
    $region26: #{vis_ebd.1} parent=1 // pred_check
      _
    $region27: #{vis_ebd.1} parent=1 // pred_check_branch
      %159 = sbr.rel (0) target = $region29
    $region28: #{vis_ebd.1} parent=1 // pred_region
      %160 = dma.done [#allocation4], 256
    $region29: #{vis_ebd.1} parent=1 // pred_fallthru
      _
    %161 = vsyncpa [#allocation3], 1
    %162 = vsyncpa [#allocation6], 1
    %163 = vsyncpa [#allocation4], 1

</llo_original>
